<compile_context>
chip_gen: v5e
topology: v5e:2x2
jax: 0.10.0
libtpu: 0.0.40
codegen_flags: <defaults>
</compile_context>

<pallas_src>
import jax
import jax.numpy as jnp
import numpy as np
from jax.experimental import pallas as pl
from jax.experimental.pallas import tpu as pltpu

D_IN = 2      # spatial coordinates (x, y) of the Stokes problem
D_OUT = 6     # ['vx', 'vy', 'p', 'ux', 'uy', 'r']
D_FINAL = 8   # + ['zx', 'zy']
HIDDEN = 32   # FeedForward inner_size


def piarch_kernel(x_ref, w1t_ref, b1_ref, w2t_ref, b2_ref, w3t_ref, b3_ref, o_ref):
    # x_ref : (D_IN, TN)        samples along lanes (lane-dense)
    # w1t   : (HIDDEN, D_IN)    b1: (HIDDEN, 1)
    # w2t   : (HIDDEN, HIDDEN)  b2: (HIDDEN, 1)
    # w3t   : (D_FINAL, HIDDEN) with zx/zy columns folded in; b3: (D_FINAL, 1)
    x = x_ref[...]
    w1t = w1t_ref[...]
    # Layer 1 (K=2): two lane-broadcast FMAs on the VPU; keeps the MXU free.
    h1 = jnp.tanh(w1t[:, 0:1] * x[0:1, :] + w1t[:, 1:2] * x[1:2, :] + b1_ref[...])
    # Layer 2: (32,32) @ (32,TN) on the MXU, f32 accumulation.
    h2 = jnp.tanh(
        jnp.dot(w2t_ref[...], h1, preferred_element_type=jnp.float32) + b2_ref[...]
    )
    # Layer 3 with zx/zy folded into 8 output rows: single contiguous lane-dense store.
    o_ref[...] = (
        jnp.dot(w3t_ref[...], h2, preferred_element_type=jnp.float32) + b3_ref[...]
    )


def _pick_tile(n, max_tile=2048, min_steps=4):
    # Largest lane tile (multiple of 128, divides n, <= max_tile), preferring to keep
    # at least `min_steps` grid steps so both v7x TensorCores see work.
    assert n % 128 == 0, "batch must be a multiple of 128 (lane width)"
    cands = [t for t in range(128, min(n, max_tile) + 1, 128) if n % t == 0]
    good = [t for t in cands if n // t >= min_steps]
    return max(good) if good else max(cands)


def piarch_net(x, params):
    w1, b1, w2, b2, w3, b3 = params
    n = x.shape[0]
    tn = _pick_tile(n)

    # Lane-dense layout: features on sublanes, samples on lanes (wrapper-side plumbing).
    xt = jnp.asarray(x, jnp.float32).T                       # (D_IN, N)
    w1t = w1.T                                               # (HIDDEN, D_IN)
    b1t = b1.reshape(HIDDEN, 1)
    w2t = w2.T                                               # (HIDDEN, HIDDEN)
    b2t = b2.reshape(HIDDEN, 1)
    # Fold zx = 0.008*'ux', zy = 0.008*'uy' into the output layer (6 -> 8 columns).
    w3p = jnp.concatenate([w3, 0.008 * w3[:, 3:4], 0.008 * w3[:, 4:5]], axis=1)
    b3p = jnp.concatenate([b3, 0.008 * b3[:, 3:4], 0.008 * b3[:, 4:5]], axis=1)
    w3t = w3p.T                                              # (D_FINAL, HIDDEN)
    b3t = b3p.reshape(D_FINAL, 1)

    resident = lambda shape: pl.BlockSpec(shape, lambda i: (0, 0))  # VMEM-resident params
    out_t = pl.pallas_call(
        piarch_kernel,
        out_shape=jax.ShapeDtypeStruct((D_FINAL, n), jnp.float32),
        grid_spec=pltpu.PrefetchScalarGridSpec(
            num_scalar_prefetch=0,
            grid=(n // tn,),
            in_specs=[
                pl.BlockSpec((D_IN, tn), lambda i: (0, i)),   # x slab (samples on lanes)
                resident((HIDDEN, D_IN)),                     # W1^T
                resident((HIDDEN, 1)),                        # b1
                resident((HIDDEN, HIDDEN)),                   # W2^T
                resident((HIDDEN, 1)),                        # b2
                resident((D_FINAL, HIDDEN)),                  # W3'^T (zx/zy folded in)
                resident((D_FINAL, 1)),                       # b3'
            ],
            out_specs=pl.BlockSpec((D_FINAL, tn), lambda i: (0, i)),
        ),
        compiler_params=pltpu.CompilerParams(
            dimension_semantics=("parallel",),
        ),
    )(xt, w1t, b1t, w2t, b2t, w3t, b3t)
    # TODO(synk): LabelTensor string labels ('vx',...,'zy') are metadata only; the numeric
    # extract/scale/append is folded into W3'/b3' above.
    return out_t.T  # back to the PyTorch (N, 8) row-major layout


def init_params(key):
    k1, k2, k3, k4, k5, k6 = jax.random.split(key, 6)
    scale = lambda fan_in: 1.0 / np.sqrt(fan_in)
    w1 = jax.random.uniform(k1, (D_IN, HIDDEN), jnp.float32, -scale(D_IN), scale(D_IN))
    b1 = jax.random.uniform(k2, (1, HIDDEN), jnp.float32, -scale(D_IN), scale(D_IN))
    w2 = jax.random.uniform(k3, (HIDDEN, HIDDEN), jnp.float32, -scale(HIDDEN), scale(HIDDEN))
    b2 = jax.random.uniform(k4, (1, HIDDEN), jnp.float32, -scale(HIDDEN), scale(HIDDEN))
    w3 = jax.random.uniform(k5, (HIDDEN, D_OUT), jnp.float32, -scale(HIDDEN), scale(HIDDEN))
    b3 = jax.random.uniform(k6, (1, D_OUT), jnp.float32, -scale(HIDDEN), scale(HIDDEN))
    return w1, b1, w2, b2, w3, b3


def piarch_ref(x, params):
    # Pure-JAX reference of the PyTorch forward pass (exact-f32 matmuls).
    w1, b1, w2, b2, w3, b3 = params
    hp = jax.lax.Precision.HIGHEST
    h1 = jnp.tanh(jnp.dot(x, w1, precision=hp) + b1)
    h2 = jnp.tanh(jnp.dot(h1, w2, precision=hp) + b2)
    out6 = jnp.dot(h2, w3, precision=hp) + b3
    zx = out6[:, 3:4] * 0.008
    zy = out6[:, 4:5] * 0.008
    return jnp.concatenate([out6, zx, zy], axis=-1)


if __name__ == "__main__":
    key = jax.random.PRNGKey(0)
    kx, kp = jax.random.split(key)
    n = 2048  # small demo batch; multiple of 128 so samples tile the lane axis (tn=512 -> 4 steps)
    x = jax.random.normal(kx, (n, D_IN), jnp.float32)
    params = init_params(kp)

    out = jax.block_until_ready(piarch_net(x, params))
    ref = piarch_ref(x, params)

    # Tolerance allows for the MXU's reduced-precision f32 (bf16 multi-pass) matmul path
    # relative to the exact-f32 reference; everything else in the kernel is exact f32 VPU math.
    np.testing.assert_allclose(np.asarray(out), np.asarray(ref), rtol=5e-3, atol=5e-3)
    assert out.shape == (n, D_FINAL)

    print("KERNEL_OK")
</pallas_src>

<mosaic_0001>
module attributes {stable_mosaic.version = 11 : i64} {
  func.func @piarch_kernel(%arg0: i32, %arg1: memref<2x512xf32, #tpu.memory_space<vmem>>, %arg2: memref<32x2xf32, #tpu.memory_space<vmem>>, %arg3: memref<32x1xf32, #tpu.memory_space<vmem>>, %arg4: memref<32x32xf32, #tpu.memory_space<vmem>>, %arg5: memref<32x1xf32, #tpu.memory_space<vmem>>, %arg6: memref<8x32xf32, #tpu.memory_space<vmem>>, %arg7: memref<8x1xf32, #tpu.memory_space<vmem>>, %arg8: memref<8x512xf32, #tpu.memory_space<vmem>>) attributes {dimension_semantics = [#tpu.dimension_semantics<parallel>], iteration_bounds = array<i64: 4>, scalar_prefetch = 0 : i64, scratch_operands = 0 : i64, tpu.core_type = #tpu.core_type<tc>, window_params = [{transform_indices = @transform_0, window_bounds = array<i64: 2, 512>}, {pipeline_mode = #tpu.pipeline_mode<synchronous>, transform_indices = @transform_1, window_bounds = array<i64: 32, 2>}, {pipeline_mode = #tpu.pipeline_mode<synchronous>, transform_indices = @transform_2, window_bounds = array<i64: 32, 1>}, {pipeline_mode = #tpu.pipeline_mode<synchronous>, transform_indices = @transform_3, window_bounds = array<i64: 32, 32>}, {pipeline_mode = #tpu.pipeline_mode<synchronous>, transform_indices = @transform_4, window_bounds = array<i64: 32, 1>}, {pipeline_mode = #tpu.pipeline_mode<synchronous>, transform_indices = @transform_5, window_bounds = array<i64: 8, 32>}, {pipeline_mode = #tpu.pipeline_mode<synchronous>, transform_indices = @transform_6, window_bounds = array<i64: 8, 1>}, {transform_indices = @transform_7, window_bounds = array<i64: 8, 512>}]} {
    %c0 = arith.constant 0 : index
    %c0_0 = arith.constant 0 : index
    %0 = vector.load %arg1[%c0, %c0_0] : memref<2x512xf32, #tpu.memory_space<vmem>>, vector<2x512xf32>
    %c0_1 = arith.constant 0 : index
    %c0_2 = arith.constant 0 : index
    %1 = vector.load %arg2[%c0_1, %c0_2] : memref<32x2xf32, #tpu.memory_space<vmem>>, vector<32x2xf32>
    %2 = vector.extract_strided_slice %1 {offsets = [0, 0], sizes = [32, 1], strides = [1, 1]} : vector<32x2xf32> to vector<32x1xf32>
    %3 = vector.extract_strided_slice %0 {offsets = [0, 0], sizes = [1, 512], strides = [1, 1]} : vector<2x512xf32> to vector<1x512xf32>
    %4 = vector.broadcast %2 : vector<32x1xf32> to vector<32x512xf32>
    %5 = vector.broadcast %3 : vector<1x512xf32> to vector<32x512xf32>
    %6 = arith.mulf %4, %5 : vector<32x512xf32>
    %7 = vector.extract_strided_slice %1 {offsets = [0, 1], sizes = [32, 1], strides = [1, 1]} : vector<32x2xf32> to vector<32x1xf32>
    %8 = vector.extract_strided_slice %0 {offsets = [1, 0], sizes = [1, 512], strides = [1, 1]} : vector<2x512xf32> to vector<1x512xf32>
    %9 = vector.broadcast %7 : vector<32x1xf32> to vector<32x512xf32>
    %10 = vector.broadcast %8 : vector<1x512xf32> to vector<32x512xf32>
    %11 = arith.mulf %9, %10 : vector<32x512xf32>
    %12 = arith.addf %6, %11 : vector<32x512xf32>
    %c0_3 = arith.constant 0 : index
    %c0_4 = arith.constant 0 : index
    %13 = vector.load %arg3[%c0_3, %c0_4] : memref<32x1xf32, #tpu.memory_space<vmem>>, vector<32x1xf32>
    %14 = vector.broadcast %13 : vector<32x1xf32> to vector<32x512xf32>
    %15 = arith.addf %12, %14 : vector<32x512xf32>
    %16 = math.tanh %15 : vector<32x512xf32>
    %c0_5 = arith.constant 0 : index
    %c0_6 = arith.constant 0 : index
    %17 = vector.load %arg4[%c0_5, %c0_6] : memref<32x32xf32, #tpu.memory_space<vmem>>, vector<32x32xf32>
    %cst = arith.constant dense<0.000000e+00> : vector<32x512xf32>
    %18 = tpu.matmul %17, %16, %cst {dimension_numbers = #tpu.dot_dimension_numbers<[1], [0], [0], [1], [0, 0, 1, 1], [], []>} : vector<32x32xf32>, vector<32x512xf32>, vector<32x512xf32> -> vector<32x512xf32>
    %c0_7 = arith.constant 0 : index
    %c0_8 = arith.constant 0 : index
    %19 = vector.load %arg5[%c0_7, %c0_8] : memref<32x1xf32, #tpu.memory_space<vmem>>, vector<32x1xf32>
    %20 = vector.broadcast %19 : vector<32x1xf32> to vector<32x512xf32>
    %21 = arith.addf %18, %20 : vector<32x512xf32>
    %22 = math.tanh %21 : vector<32x512xf32>
    %c0_9 = arith.constant 0 : index
    %c0_10 = arith.constant 0 : index
    %23 = vector.load %arg6[%c0_9, %c0_10] : memref<8x32xf32, #tpu.memory_space<vmem>>, vector<8x32xf32>
    %cst_11 = arith.constant dense<0.000000e+00> : vector<8x512xf32>
    %24 = tpu.matmul %23, %22, %cst_11 {dimension_numbers = #tpu.dot_dimension_numbers<[1], [0], [0], [1], [0, 0, 1, 1], [], []>} : vector<8x32xf32>, vector<32x512xf32>, vector<8x512xf32> -> vector<8x512xf32>
    %c0_12 = arith.constant 0 : index
    %c0_13 = arith.constant 0 : index
    %25 = vector.load %arg7[%c0_12, %c0_13] : memref<8x1xf32, #tpu.memory_space<vmem>>, vector<8x1xf32>
    %26 = vector.broadcast %25 : vector<8x1xf32> to vector<8x512xf32>
    %27 = arith.addf %24, %26 : vector<8x512xf32>
    %c0_14 = arith.constant 0 : index
    %c0_15 = arith.constant 0 : index
    %28 = vector.load %arg8[%c0_14, %c0_15] : memref<8x512xf32, #tpu.memory_space<vmem>>, vector<8x512xf32>
    tpu.vector_store %arg8[%c0_14, %c0_15], %27 {strides = array<i32>} : memref<8x512xf32, #tpu.memory_space<vmem>>, vector<8x512xf32>,
    return
  }
  func.func @transform_0(%arg0: i32) -> (i32, i32) {
    %c0_i32 = arith.constant 0 : i32
    %c0_i32_0 = arith.constant 0 : i32
    return %c0_i32, %arg0 : i32, i32
  }
  func.func @transform_1(%arg0: i32) -> (i32, i32) {
    %c0_i32 = arith.constant 0 : i32
    %c0_i32_0 = arith.constant 0 : i32
    %c0_i32_1 = arith.constant 0 : i32
    return %c0_i32, %c0_i32_0 : i32, i32
  }
  func.func @transform_2(%arg0: i32) -> (i32, i32) {
    %c0_i32 = arith.constant 0 : i32
    %c0_i32_0 = arith.constant 0 : i32
    %c0_i32_1 = arith.constant 0 : i32
    return %c0_i32, %c0_i32_0 : i32, i32
  }
  func.func @transform_3(%arg0: i32) -> (i32, i32) {
    %c0_i32 = arith.constant 0 : i32
    %c0_i32_0 = arith.constant 0 : i32
    %c0_i32_1 = arith.constant 0 : i32
    return %c0_i32, %c0_i32_0 : i32, i32
  }
  func.func @transform_4(%arg0: i32) -> (i32, i32) {
    %c0_i32 = arith.constant 0 : i32
    %c0_i32_0 = arith.constant 0 : i32
    %c0_i32_1 = arith.constant 0 : i32
    return %c0_i32, %c0_i32_0 : i32, i32
  }
  func.func @transform_5(%arg0: i32) -> (i32, i32) {
    %c0_i32 = arith.constant 0 : i32
    %c0_i32_0 = arith.constant 0 : i32
    %c0_i32_1 = arith.constant 0 : i32
    return %c0_i32, %c0_i32_0 : i32, i32
  }
  func.func @transform_6(%arg0: i32) -> (i32, i32) {
    %c0_i32 = arith.constant 0 : i32
    %c0_i32_0 = arith.constant 0 : i32
    %c0_i32_1 = arith.constant 0 : i32
    return %c0_i32, %c0_i32_0 : i32, i32
  }
  func.func @transform_7(%arg0: i32) -> (i32, i32) {
    %c0_i32 = arith.constant 0 : i32
    %c0_i32_0 = arith.constant 0 : i32
    return %c0_i32, %arg0 : i32, i32
  }
}

</mosaic_0001>

<llo_original>
// kernel: tpu_custom_call.1
$region0: #{tpu_custom_call.1}
  #allocation0 [shape = 'u32[]', space=smem, size = 0x4, offset = 0x4, fixed_abs, tag = 'smem constant byte address 0x4 - core index']
  #allocation1 [shape = 'u32[72,128]{1,0:T(1,128)}', space=vmem, size = 0x9000, scoped, tag = 'internal scratch']
  %s0 = inlined_call_operand.vmem [shape: f32[2,2048], index: 0, kind: input, shape index: {}]
  %s1 = inlined_call_operand.vmem [shape: f32[32,2], index: 1, kind: input, shape index: {}]
  %s2 = inlined_call_operand.vmem [shape: f32[32,1], index: 2, kind: input, shape index: {}]
  %s3 = inlined_call_operand.vmem [shape: f32[32,32], index: 3, kind: input, shape index: {}]
  %s4 = inlined_call_operand.vmem [shape: f32[32,1], index: 4, kind: input, shape index: {}]
  %s5 = inlined_call_operand.vmem [shape: f32[8,32], index: 5, kind: input, shape index: {}]
  %s6 = inlined_call_operand.vmem [shape: f32[8,1], index: 6, kind: input, shape index: {}]
  %s7 = inlined_call_operand.hbm [shape: f32[8,2048], index: 7, kind: output, shape index: {}]
  %s8 = sld [smem:[#allocation0]]
  $region61: #{tpu_custom_call.1} parent=0
    _
  %s10 = ssub.s32 1, %s8
  %s11 = scalar_select 0, %s10, %s8
  $region1: #{tpu_custom_call.1} parent=0
    #allocation2 [shape = 'u8[32768]{0}', space=vmem, size = 0x8000, scoped, tag = 'output window, operand 0']
    #allocation3 [shape = 's32[2]{0}', space=sflag, size = 0x8, scoped, tag = 'scoped memory for tpu_custom_call.1']
    %12 = vsyncpa [#allocation3], 0
    %s13 = scalar_lea.sflag [#allocation3], 1
    %14 = vsyncpa %s13, 0
    loop: start=0, step=1, limit=6
    $region2: #{tpu_custom_call.1} parent=1 // loop_pre_header
      _
    $region3: #{tpu_custom_call.1} parent=1 // loop_header
      %s16 = sphi 0, %s20
      %p17 = scmp.ge.s32.totalorder %s16, 6
      %s26 = sphi 0, %s28
      %s29 = sphi 0, %s26
      %s30 = sphi 0, %s29
      %s46 = sphi 0, %s30
      %s50 = sphi 0, %s50
      %s52 = sphi 0, %s50
      %s53 = sphi 0, %s52
      %s67 = sphi 0, %s53
      %s71 = sphi 0, %s71
      %s73 = sphi 0, %s71
      %s74 = sphi 0, %s73
      %s88 = sphi 0, %s74
      %s92 = sphi 0, %s92
      %s94 = sphi 0, %s92
      %s95 = sphi 0, %s94
      %s109 = sphi 0, %s95
      %s113 = sphi 0, %s113
      %s115 = sphi 0, %s113
      %s116 = sphi 0, %s115
      %s130 = sphi 0, %s116
      %s134 = sphi 0, %s134
      %s136 = sphi 0, %s134
      %s137 = sphi 0, %s136
      %s151 = sphi 0, %s137
      %s155 = sphi 0, %s155
      %s157 = sphi 0, %s155
      %s158 = sphi 0, %s157
      %s172 = sphi 0, %s158
      %s178 = sphi 0, %s180
      %s181 = sphi 0, %s178
      %s182 = sphi 0, %s181
      %s198 = sphi 0, %s182
    $region4: #{tpu_custom_call.1} parent=1 // loop_header_branch
      %19 = sbr.rel (%p17) target = $region8
    $region5: #{tpu_custom_call.1} parent=1 // loop_body
      %s21 = ssub.s32 %s16, 1
      %s22 = ssub.s32 %s16, 2
      %s23 = sadd.s32 %s16, 1
      %s24 = ssub.s32 %s16, %s23
      %p25 = scmp.eq.s32.totalorder %s24, 0
      %s27 = sadd.s32 %s26, 1
      %s28 = scalar_select %p25, %s26, %s27
      %p31 = pneg %p25
      %p32 = scmp.eq.s32.totalorder %s16, 3
      %p33 = por %p31, %p32
      %p34 = scmp.ne.s32.totalorder %s26, %s29
      %p35 = scmp.eq.s32.totalorder %s16, 0
      %p36 = por %p34, %p35
      %p37 = scmp.ne.s32.totalorder %s26, %s29
      %p38 = scmp.eq.s32.totalorder %s21, 3
      %p39 = por %p37, %p38
      %p40 = scmp.ne.s32.totalorder %s29, %s30
      %p41 = scmp.eq.s32.totalorder %s21, 0
      %p42 = por %p40, %p41
      %p43 = scmp.ne.s32.totalorder %s29, %s30
      %p44 = scmp.eq.s32.totalorder %s22, 3
      %p45 = por %p43, %p44
      %p47 = scmp.ne.s32.totalorder %s30, %s46
      %p48 = scmp.eq.s32.totalorder %s22, 0
      %p49 = por %p47, %p48
      %s51 = sadd.s32 %s50, 1
      %p54 = scmp.eq.s32.totalorder %s16, 3
      %p55 = scmp.ne.s32.totalorder %s50, %s52
      %p56 = scmp.eq.s32.totalorder %s16, 0
      %p57 = por %p55, %p56
      %p58 = scmp.ne.s32.totalorder %s50, %s52
      %p59 = scmp.eq.s32.totalorder %s21, 3
      %p60 = por %p58, %p59
      %p61 = scmp.ne.s32.totalorder %s52, %s53
      %p62 = scmp.eq.s32.totalorder %s21, 0
      %p63 = por %p61, %p62
      %p64 = scmp.ne.s32.totalorder %s52, %s53
      %p65 = scmp.eq.s32.totalorder %s22, 3
      %p66 = por %p64, %p65
      %p68 = scmp.ne.s32.totalorder %s53, %s67
      %p69 = scmp.eq.s32.totalorder %s22, 0
      %p70 = por %p68, %p69
      %s72 = sadd.s32 %s71, 1
      %p75 = scmp.eq.s32.totalorder %s16, 3
      %p76 = scmp.ne.s32.totalorder %s71, %s73
      %p77 = scmp.eq.s32.totalorder %s16, 0
      %p78 = por %p76, %p77
      %p79 = scmp.ne.s32.totalorder %s71, %s73
      %p80 = scmp.eq.s32.totalorder %s21, 3
      %p81 = por %p79, %p80
      %p82 = scmp.ne.s32.totalorder %s73, %s74
      %p83 = scmp.eq.s32.totalorder %s21, 0
      %p84 = por %p82, %p83
      %p85 = scmp.ne.s32.totalorder %s73, %s74
      %p86 = scmp.eq.s32.totalorder %s22, 3
      %p87 = por %p85, %p86
      %p89 = scmp.ne.s32.totalorder %s74, %s88
      %p90 = scmp.eq.s32.totalorder %s22, 0
      %p91 = por %p89, %p90
      %s93 = sadd.s32 %s92, 1
      %p96 = scmp.eq.s32.totalorder %s16, 3
      %p97 = scmp.ne.s32.totalorder %s92, %s94
      %p98 = scmp.eq.s32.totalorder %s16, 0
      %p99 = por %p97, %p98
      %p100 = scmp.ne.s32.totalorder %s92, %s94
      %p101 = scmp.eq.s32.totalorder %s21, 3
      %p102 = por %p100, %p101
      %p103 = scmp.ne.s32.totalorder %s94, %s95
      %p104 = scmp.eq.s32.totalorder %s21, 0
      %p105 = por %p103, %p104
      %p106 = scmp.ne.s32.totalorder %s94, %s95
      %p107 = scmp.eq.s32.totalorder %s22, 3
      %p108 = por %p106, %p107
      %p110 = scmp.ne.s32.totalorder %s95, %s109
      %p111 = scmp.eq.s32.totalorder %s22, 0
      %p112 = por %p110, %p111
      %s114 = sadd.s32 %s113, 1
      %p117 = scmp.eq.s32.totalorder %s16, 3
      %p118 = scmp.ne.s32.totalorder %s113, %s115
      %p119 = scmp.eq.s32.totalorder %s16, 0
      %p120 = por %p118, %p119
      %p121 = scmp.ne.s32.totalorder %s113, %s115
      %p122 = scmp.eq.s32.totalorder %s21, 3
      %p123 = por %p121, %p122
      %p124 = scmp.ne.s32.totalorder %s115, %s116
      %p125 = scmp.eq.s32.totalorder %s21, 0
      %p126 = por %p124, %p125
      %p127 = scmp.ne.s32.totalorder %s115, %s116
      %p128 = scmp.eq.s32.totalorder %s22, 3
      %p129 = por %p127, %p128
      %p131 = scmp.ne.s32.totalorder %s116, %s130
      %p132 = scmp.eq.s32.totalorder %s22, 0
      %p133 = por %p131, %p132
      %s135 = sadd.s32 %s134, 1
      %p138 = scmp.eq.s32.totalorder %s16, 3
      %p139 = scmp.ne.s32.totalorder %s134, %s136
      %p140 = scmp.eq.s32.totalorder %s16, 0
      %p141 = por %p139, %p140
      %p142 = scmp.ne.s32.totalorder %s134, %s136
      %p143 = scmp.eq.s32.totalorder %s21, 3
      %p144 = por %p142, %p143
      %p145 = scmp.ne.s32.totalorder %s136, %s137
      %p146 = scmp.eq.s32.totalorder %s21, 0
      %p147 = por %p145, %p146
      %p148 = scmp.ne.s32.totalorder %s136, %s137
      %p149 = scmp.eq.s32.totalorder %s22, 3
      %p150 = por %p148, %p149
      %p152 = scmp.ne.s32.totalorder %s137, %s151
      %p153 = scmp.eq.s32.totalorder %s22, 0
      %p154 = por %p152, %p153
      %s156 = sadd.s32 %s155, 1
      %p159 = scmp.eq.s32.totalorder %s16, 3
      %p160 = scmp.ne.s32.totalorder %s155, %s157
      %p161 = scmp.eq.s32.totalorder %s16, 0
      %p162 = por %p160, %p161
      %p163 = scmp.ne.s32.totalorder %s155, %s157
      %p164 = scmp.eq.s32.totalorder %s21, 3
      %p165 = por %p163, %p164
      %p166 = scmp.ne.s32.totalorder %s157, %s158
      %p167 = scmp.eq.s32.totalorder %s21, 0
      %p168 = por %p166, %p167
      %p169 = scmp.ne.s32.totalorder %s157, %s158
      %p170 = scmp.eq.s32.totalorder %s22, 3
      %p171 = por %p169, %p170
      %p173 = scmp.ne.s32.totalorder %s158, %s172
      %p174 = scmp.eq.s32.totalorder %s22, 0
      %p175 = por %p173, %p174
      %s176 = ssub.s32 %s16, %s23
      %p177 = scmp.eq.s32.totalorder %s176, 0
      %s179 = sadd.s32 %s178, 1
      %s180 = scalar_select %p177, %s178, %s179
      %p183 = pneg %p177
      %p184 = scmp.eq.s32.totalorder %s16, 3
      %p185 = por %p183, %p184
      %p186 = scmp.ne.s32.totalorder %s178, %s181
      %p187 = scmp.eq.s32.totalorder %s16, 0
      %p188 = por %p186, %p187
      %p189 = scmp.ne.s32.totalorder %s178, %s181
      %p190 = scmp.eq.s32.totalorder %s21, 3
      %p191 = por %p189, %p190
      %p192 = scmp.ne.s32.totalorder %s181, %s182
      %p193 = scmp.eq.s32.totalorder %s21, 0
      %p194 = por %p192, %p193
      %p195 = scmp.ne.s32.totalorder %s181, %s182
      %p196 = scmp.eq.s32.totalorder %s22, 3
      %p197 = por %p195, %p196
      %p199 = scmp.ne.s32.totalorder %s182, %s198
      %p200 = scmp.eq.s32.totalorder %s22, 0
      %p201 = por %p199, %p200
      %p202 = scmp.le.s32.totalorder 1, %s16
      %p203 = scmp.lt.s32.totalorder %s16, 5
      %p204 = pnand %p202, %p203
      %p205 = pneg %p204
      // Predicated region
      $region9: #{tpu_custom_call.1} parent=5 // pred_check
        _
      $region10: #{tpu_custom_call.1} parent=5 // pred_check_branch
        %207 = sbr.rel (%p204) target = $region12
      $region11: #{tpu_custom_call.1} parent=5 // pred_region
        %s208 = ssub.s32 %s16, 1
        // Predicated region
        $region13: #{tpu_custom_call.1} parent=11 // pred_check
          %p209 = pneg %p63
        $region14: #{tpu_custom_call.1} parent=11 // pred_check_branch
          %211 = sbr.rel (%p209) target = $region16
        $region15: #{tpu_custom_call.1} parent=11 // pred_region
          _
        $region16: #{tpu_custom_call.1} parent=11 // pred_fallthru
          _
        // Predicated region
        $region17: #{tpu_custom_call.1} parent=11 // pred_check
          %p212 = pneg %p84
        $region18: #{tpu_custom_call.1} parent=11 // pred_check_branch
          %214 = sbr.rel (%p212) target = $region20
        $region19: #{tpu_custom_call.1} parent=11 // pred_region
          _
        $region20: #{tpu_custom_call.1} parent=11 // pred_fallthru
          _
        // Predicated region
        $region21: #{tpu_custom_call.1} parent=11 // pred_check
          %p215 = pneg %p105
        $region22: #{tpu_custom_call.1} parent=11 // pred_check_branch
          %217 = sbr.rel (%p215) target = $region24
        $region23: #{tpu_custom_call.1} parent=11 // pred_region
          _
        $region24: #{tpu_custom_call.1} parent=11 // pred_fallthru
          _
        // Predicated region
        $region25: #{tpu_custom_call.1} parent=11 // pred_check
          %p218 = pneg %p126
        $region26: #{tpu_custom_call.1} parent=11 // pred_check_branch
          %220 = sbr.rel (%p218) target = $region28
        $region27: #{tpu_custom_call.1} parent=11 // pred_region
          _
        $region28: #{tpu_custom_call.1} parent=11 // pred_fallthru
          _
        // Predicated region
        $region29: #{tpu_custom_call.1} parent=11 // pred_check
          %p221 = pneg %p147
        $region30: #{tpu_custom_call.1} parent=11 // pred_check_branch
          %223 = sbr.rel (%p221) target = $region32
        $region31: #{tpu_custom_call.1} parent=11 // pred_region
          _
        $region32: #{tpu_custom_call.1} parent=11 // pred_fallthru
          _
        // Predicated region
        $region33: #{tpu_custom_call.1} parent=11 // pred_check
          %p224 = pneg %p168
        $region34: #{tpu_custom_call.1} parent=11 // pred_check_branch
          %226 = sbr.rel (%p224) target = $region36
        $region35: #{tpu_custom_call.1} parent=11 // pred_region
          _
        $region36: #{tpu_custom_call.1} parent=11 // pred_fallthru
          _
      $region12: #{tpu_custom_call.1} parent=5 // pred_fallthru
        _
      %p227 = scmp.lt.s32.totalorder %s16, 4
      // Predicated region
      $region37: #{tpu_custom_call.1} parent=5 // pred_check
        %p228 = pneg %p227
      $region38: #{tpu_custom_call.1} parent=5 // pred_check_branch
        %230 = sbr.rel (%p228) target = $region40
      $region39: #{tpu_custom_call.1} parent=5 // pred_region
        // Predicated region
        $region41: #{tpu_custom_call.1} parent=39 // pred_check
          %p231 = pneg %p36
        $region42: #{tpu_custom_call.1} parent=39 // pred_check_branch
          %233 = sbr.rel (%p231) target = $region44
        $region43: #{tpu_custom_call.1} parent=39 // pred_region
          %s234 = smul.u32 4, %s16
          %p235 = scmp.lt.s32.totalorder %s234, 15
          %s236 = scalar_select %p235, %s234, 15
          %s237 = smul.addr %s236, 2
          %s238 = scalar_lea.vmem %s0, %s237
          %s239 = smul.u32 4, %s16
        $region44: #{tpu_custom_call.1} parent=39 // pred_fallthru
          _
      $region40: #{tpu_custom_call.1} parent=5 // pred_fallthru
        _
      %p240 = scmp.le.s32.totalorder 1, %s16
      %p241 = scmp.lt.s32.totalorder %s16, 5
      %p242 = pnand %p240, %p241
      %p243 = pneg %p242
      // Predicated region
      $region45: #{tpu_custom_call.1} parent=5 // pred_check
        _
      $region46: #{tpu_custom_call.1} parent=5 // pred_check_branch
        %245 = sbr.rel (%p242) target = $region48
      $region47: #{tpu_custom_call.1} parent=5 // pred_region
        %s246 = ssub.s32 %s16, 1
        %s247 = smul.u32 4, %s21
        %p248 = scmp.lt.s32.totalorder %s247, 15
        %s249 = scalar_select %p248, %s247, 15
        %s250 = smul.addr %s249, 2
        %s251 = scalar_lea.vmem %s0, %s250
        %p252 = pneg %p42
        %p253 = pneg %p39
        %p254 = pneg %p63
        %p255 = pneg %p60
        %p256 = pneg %p84
        %p257 = pneg %p81
        %p258 = pneg %p105
        %p259 = pneg %p102
        %p260 = pneg %p126
        %p261 = pneg %p123
        %p262 = pneg %p147
        %p263 = pneg %p144
        %p264 = pneg %p168
        %p265 = pneg %p165
        %p266 = pneg %p194
        %p267 = pneg %p191
        %s268 = sand.u32 %s181, 1
        %s269 = scalar_lea.sflag [#allocation3], %s268
        %s270 = sand.u32 %s181, 1
        %s271 = smul.addr %s270, 32
        %s272 = scalar_lea.vmem [#allocation2], %s271
        %s273 = smul.u32 4, %s21
        %p274 = scmp.lt.s32.totalorder %s273, 15
        %s275 = scalar_select %p274, %s273, 15
        %s276 = smul.addr %s275, 2
        %s277 = scalar_lea.vmem %s0, %s276
        %s278 = smul.u32 4, %s21
        %s279 = smul.u32 4, %s21
        %v280 = vld [vmem:[%s277] sm:$0xff]
        %v281 = vld [vmem:[%s1] sm:$0xff]
        %v282 = vld [vmem:[%s1 + $0x8] sm:$0xff]
        %v283 = vld [vmem:[%s1 + $0x10] sm:$0xff]
        %v284 = vld [vmem:[%s1 + $0x18] sm:$0xff]
        %286 = vset.pattern.permute.xlu0 0
        %287 = vperm.xlu0 %286, %v281
        %v288 = vpop.permute.xlu0 %287
        %291 = vset.pattern.permute.xlu0 0
        %292 = vperm.xlu0 %291, %v282
        %v293 = vpop.permute.xlu0 %292
        %296 = vset.pattern.permute.xlu0 0
        %297 = vperm.xlu0 %296, %v283
        %v298 = vpop.permute.xlu0 %297
        %301 = vset.pattern.permute.xlu0 0
        %302 = vperm.xlu0 %301, %v284
        %v303 = vpop.permute.xlu0 %302
        %v306 = vperm.slane %v280, 0
        %v307 = vperm.slane %v280, 2
        %v308 = vperm.slane %v280, 4
        %v309 = vperm.slane %v280, 6
        %v314 = vperm.slane %v306, 0
        %v315 = vperm.slane %v307, 0
        %v316 = vperm.slane %v308, 0
        %v317 = vperm.slane %v309, 0
        %v318 = vmul.f32 %v288, %v314
        %v319 = vmul.f32 %v288, %v315
        %v320 = vmul.f32 %v288, %v316
        %v321 = vmul.f32 %v288, %v317
        %v322 = vmul.f32 %v293, %v314
        %v323 = vmul.f32 %v293, %v315
        %v324 = vmul.f32 %v293, %v316
        %v325 = vmul.f32 %v293, %v317
        %v326 = vmul.f32 %v298, %v314
        %v327 = vmul.f32 %v298, %v315
        %v328 = vmul.f32 %v298, %v316
        %v329 = vmul.f32 %v298, %v317
        %v330 = vmul.f32 %v303, %v314
        %v331 = vmul.f32 %v303, %v315
        %v332 = vmul.f32 %v303, %v316
        %v333 = vmul.f32 %v303, %v317
        %334 = vset.pattern.permute.xlu0 1
        %335 = vperm.xlu0 %334, %v281
        %v336 = vpop.permute.xlu0 %335
        %338 = vset.pattern.permute.xlu0 1
        %339 = vperm.xlu0 %338, %v282
        %v340 = vpop.permute.xlu0 %339
        %342 = vset.pattern.permute.xlu0 1
        %343 = vperm.xlu0 %342, %v283
        %v344 = vpop.permute.xlu0 %343
        %346 = vset.pattern.permute.xlu0 1
        %347 = vperm.xlu0 %346, %v284
        %v348 = vpop.permute.xlu0 %347
        %v350 = vperm.slane %v280, 1
        %v351 = vperm.slane %v280, 3
        %v352 = vperm.slane %v280, 5
        %v353 = vperm.slane %v280, 7
        %v358 = vperm.slane %v350, 1
        %v359 = vperm.slane %v351, 1
        %v360 = vperm.slane %v352, 1
        %v361 = vperm.slane %v353, 1
        %v362 = vmul.f32 %v336, %v358
        %v363 = vmul.f32 %v336, %v359
        %v364 = vmul.f32 %v336, %v360
        %v365 = vmul.f32 %v336, %v361
        %v366 = vmul.f32 %v340, %v358
        %v367 = vmul.f32 %v340, %v359
        %v368 = vmul.f32 %v340, %v360
        %v369 = vmul.f32 %v340, %v361
        %v370 = vmul.f32 %v344, %v358
        %v371 = vmul.f32 %v344, %v359
        %v372 = vmul.f32 %v344, %v360
        %v373 = vmul.f32 %v344, %v361
        %v374 = vmul.f32 %v348, %v358
        %v375 = vmul.f32 %v348, %v359
        %v376 = vmul.f32 %v348, %v360
        %v377 = vmul.f32 %v348, %v361
        %v378 = vadd.f32 %v318, %v362
        %v379 = vadd.f32 %v319, %v363
        %v380 = vadd.f32 %v320, %v364
        %v381 = vadd.f32 %v321, %v365
        %v382 = vadd.f32 %v322, %v366
        %v383 = vadd.f32 %v323, %v367
        %v384 = vadd.f32 %v324, %v368
        %v385 = vadd.f32 %v325, %v369
        %v386 = vadd.f32 %v326, %v370
        %v387 = vadd.f32 %v327, %v371
        %v388 = vadd.f32 %v328, %v372
        %v389 = vadd.f32 %v329, %v373
        %v390 = vadd.f32 %v330, %v374
        %v391 = vadd.f32 %v331, %v375
        %v392 = vadd.f32 %v332, %v376
        %v393 = vadd.f32 %v333, %v377
        %v394 = vld [vmem:[%s2] sm:$0xff]
        %v395 = vld [vmem:[%s2 + $0x8] sm:$0xff]
        %v396 = vld [vmem:[%s2 + $0x10] sm:$0xff]
        %v397 = vld [vmem:[%s2 + $0x18] sm:$0xff]
        %399 = vset.pattern.permute.xlu0 0
        %400 = vperm.xlu0 %399, %v394
        %v401 = vpop.permute.xlu0 %400
        %404 = vset.pattern.permute.xlu0 0
        %405 = vperm.xlu0 %404, %v395
        %v406 = vpop.permute.xlu0 %405
        %409 = vset.pattern.permute.xlu0 0
        %410 = vperm.xlu0 %409, %v396
        %v411 = vpop.permute.xlu0 %410
        %414 = vset.pattern.permute.xlu0 0
        %415 = vperm.xlu0 %414, %v397
        %v416 = vpop.permute.xlu0 %415
        %v418 = vadd.f32 %v378, %v401
        %v419 = vadd.f32 %v379, %v401
        %v420 = vadd.f32 %v380, %v401
        %v421 = vadd.f32 %v381, %v401
        %v422 = vadd.f32 %v382, %v406
        %v423 = vadd.f32 %v383, %v406
        %v424 = vadd.f32 %v384, %v406
        %v425 = vadd.f32 %v385, %v406
        %v426 = vadd.f32 %v386, %v411
        %v427 = vadd.f32 %v387, %v411
        %v428 = vadd.f32 %v388, %v411
        %v429 = vadd.f32 %v389, %v411
        %v430 = vadd.f32 %v390, %v416
        %v431 = vadd.f32 %v391, %v416
        %v432 = vadd.f32 %v392, %v416
        %v433 = vadd.f32 %v393, %v416
        %v434 = vtanh.pop %v418
        %v435 = vtanh.pop %v419
        %v436 = vtanh.pop %v420
        %v437 = vtanh.pop %v421
        %v438 = vtanh.pop %v422
        %v439 = vtanh.pop %v423
        %v440 = vtanh.pop %v424
        %v441 = vtanh.pop %v425
        %v442 = vtanh.pop %v426
        %v443 = vtanh.pop %v427
        %v444 = vtanh.pop %v428
        %v445 = vtanh.pop %v429
        %v446 = vtanh.pop %v430
        %v447 = vtanh.pop %v431
        %v448 = vtanh.pop %v432
        %v449 = vtanh.pop %v433
        %v450 = vld [vmem:[%s3] sm:$0xff]
        %v451 = vld [vmem:[%s3 + $0x8] sm:$0xff]
        %v452 = vld [vmem:[%s3 + $0x10] sm:$0xff]
        %v453 = vld [vmem:[%s3 + $0x18] sm:$0xff]
        %v454 = vld [vmem:[%s4] sm:$0xff]
        %v455 = vld [vmem:[%s4 + $0x8] sm:$0xff]
        %v456 = vld [vmem:[%s4 + $0x10] sm:$0xff]
        %v457 = vld [vmem:[%s4 + $0x18] sm:$0xff]
        %459 = vset.pattern.permute.xlu0 0
        %460 = vperm.xlu0 %459, %v454
        %v461 = vpop.permute.xlu0 %460
        %464 = vset.pattern.permute.xlu0 0
        %465 = vperm.xlu0 %464, %v455
        %v466 = vpop.permute.xlu0 %465
        %469 = vset.pattern.permute.xlu0 0
        %470 = vperm.xlu0 %469, %v456
        %v471 = vpop.permute.xlu0 %470
        %474 = vset.pattern.permute.xlu0 0
        %475 = vperm.xlu0 %474, %v457
        %v476 = vpop.permute.xlu0 %475
        %vm478 = vcmask 261120
        %v480 = vsel %vm478, %v450, 0
        %v483 = vsel %vm478, %v451, 0
        %v486 = vsel %vm478, %v452, 0
        %v489 = vsel %vm478, %v453, 0
        %491 = vmatpush.msra.mxu0 0.0
        %492 = vmatpush.msra.mxu0 0.0
        %493 = vmatpush.msra.mxu0 0.0
        %494 = vmatpush.msra.mxu0 0.0
        %495 = vmatpush.msra.mxu0 0.0
        %496 = vmatpush.msra.mxu0 0.0
        %497 = vmatpush.msra.mxu0 0.0
        %498 = vmatpush.msra.mxu0 0.0
        %499 = vmatpush.msra.mxu0 0.0
        %500 = vmatpush.msra.mxu0 0.0
        %501 = vmatpush.msra.mxu0 0.0
        %502 = vmatpush.msra.mxu0 0.0
        %503 = vmatpush.msra.mxu0 %v446
        %504 = vmatpush.msra.mxu0 %v442
        %505 = vmatpush.msra.mxu0 %v438
        %506 = vmatpush.msra.mxu0 %v434
        %507 = vmatmul.f32.gmra.mxu0 %v480
        %v508 = vpop.f32.mrf.mxu0
        %v509 = vadd.f32 %v461, %v508
        %510 = vmatmul.f32.gmra.mxu0 %v483
        %v511 = vpop.f32.mrf.mxu0
        %v512 = vadd.f32 %v466, %v511
        %513 = vmatmul.f32.gmra.mxu0 %v486
        %v514 = vpop.f32.mrf.mxu0
        %v515 = vadd.f32 %v471, %v514
        %516 = vmatmul.f32.gmra.mxu0 %v489
        %v517 = vpop.f32.mrf.mxu0
        %v518 = vadd.f32 %v476, %v517
        %519 = vdwg.mxu0
        %520 = vmatpush.msra.mxu0 0.0
        %521 = vmatpush.msra.mxu0 0.0
        %522 = vmatpush.msra.mxu0 0.0
        %523 = vmatpush.msra.mxu0 0.0
        %524 = vmatpush.msra.mxu0 0.0
        %525 = vmatpush.msra.mxu0 0.0
        %526 = vmatpush.msra.mxu0 0.0
        %527 = vmatpush.msra.mxu0 0.0
        %528 = vmatpush.msra.mxu0 0.0
        %529 = vmatpush.msra.mxu0 0.0
        %530 = vmatpush.msra.mxu0 0.0
        %531 = vmatpush.msra.mxu0 0.0
        %532 = vmatpush.msra.mxu0 %v447
        %533 = vmatpush.msra.mxu0 %v443
        %534 = vmatpush.msra.mxu0 %v439
        %535 = vmatpush.msra.mxu0 %v435
        %536 = vmatmul.f32.gmra.mxu0 %v480
        %v537 = vpop.f32.mrf.mxu0
        %v538 = vadd.f32 %v461, %v537
        %539 = vmatmul.f32.gmra.mxu0 %v483
        %v540 = vpop.f32.mrf.mxu0
        %v541 = vadd.f32 %v466, %v540
        %542 = vmatmul.f32.gmra.mxu0 %v486
        %v543 = vpop.f32.mrf.mxu0
        %v544 = vadd.f32 %v471, %v543
        %545 = vmatmul.f32.gmra.mxu0 %v489
        %v546 = vpop.f32.mrf.mxu0
        %v547 = vadd.f32 %v476, %v546
        %548 = vdwg.mxu0
        %549 = vmatpush.msra.mxu0 0.0
        %550 = vmatpush.msra.mxu0 0.0
        %551 = vmatpush.msra.mxu0 0.0
        %552 = vmatpush.msra.mxu0 0.0
        %553 = vmatpush.msra.mxu0 0.0
        %554 = vmatpush.msra.mxu0 0.0
        %555 = vmatpush.msra.mxu0 0.0
        %556 = vmatpush.msra.mxu0 0.0
        %557 = vmatpush.msra.mxu0 0.0
        %558 = vmatpush.msra.mxu0 0.0
        %559 = vmatpush.msra.mxu0 0.0
        %560 = vmatpush.msra.mxu0 0.0
        %561 = vmatpush.msra.mxu0 %v448
        %562 = vmatpush.msra.mxu0 %v444
        %563 = vmatpush.msra.mxu0 %v440
        %564 = vmatpush.msra.mxu0 %v436
        %565 = vmatmul.f32.gmra.mxu0 %v480
        %v566 = vpop.f32.mrf.mxu0
        %v567 = vadd.f32 %v461, %v566
        %568 = vmatmul.f32.gmra.mxu0 %v483
        %v569 = vpop.f32.mrf.mxu0
        %v570 = vadd.f32 %v466, %v569
        %571 = vmatmul.f32.gmra.mxu0 %v486
        %v572 = vpop.f32.mrf.mxu0
        %v573 = vadd.f32 %v471, %v572
        %574 = vmatmul.f32.gmra.mxu0 %v489
        %v575 = vpop.f32.mrf.mxu0
        %v576 = vadd.f32 %v476, %v575
        %577 = vdwg.mxu0
        %578 = vmatpush.msra.mxu0 0.0
        %579 = vmatpush.msra.mxu0 0.0
        %580 = vmatpush.msra.mxu0 0.0
        %581 = vmatpush.msra.mxu0 0.0
        %582 = vmatpush.msra.mxu0 0.0
        %583 = vmatpush.msra.mxu0 0.0
        %584 = vmatpush.msra.mxu0 0.0
        %585 = vmatpush.msra.mxu0 0.0
        %586 = vmatpush.msra.mxu0 0.0
        %587 = vmatpush.msra.mxu0 0.0
        %588 = vmatpush.msra.mxu0 0.0
        %589 = vmatpush.msra.mxu0 0.0
        %590 = vmatpush.msra.mxu0 %v449
        %591 = vmatpush.msra.mxu0 %v445
        %592 = vmatpush.msra.mxu0 %v441
        %593 = vmatpush.msra.mxu0 %v437
        %594 = vmatmul.f32.gmra.mxu0 %v480
        %v595 = vpop.f32.mrf.mxu0
        %v596 = vadd.f32 %v461, %v595
        %597 = vmatmul.f32.gmra.mxu0 %v483
        %v598 = vpop.f32.mrf.mxu0
        %v599 = vadd.f32 %v466, %v598
        %600 = vmatmul.f32.gmra.mxu0 %v486
        %v601 = vpop.f32.mrf.mxu0
        %v602 = vadd.f32 %v471, %v601
        %603 = vmatmul.f32.gmra.mxu0 %v489
        %v604 = vpop.f32.mrf.mxu0
        %v605 = vadd.f32 %v476, %v604
        %606 = vdwg.mxu0
        %v607 = vtanh.pop %v509
        %v608 = vtanh.pop %v538
        %v609 = vtanh.pop %v567
        %v610 = vtanh.pop %v596
        %v611 = vtanh.pop %v512
        %v612 = vtanh.pop %v541
        %v613 = vtanh.pop %v570
        %v614 = vtanh.pop %v599
        %v615 = vtanh.pop %v515
        %v616 = vtanh.pop %v544
        %v617 = vtanh.pop %v573
        %v618 = vtanh.pop %v602
        %v619 = vtanh.pop %v518
        %v620 = vtanh.pop %v547
        %v621 = vtanh.pop %v576
        %v622 = vtanh.pop %v605
        %v623 = vld [vmem:[%s5] sm:$0xff]
        %v624 = vld [vmem:[%s6] sm:$0xff]
        %626 = vset.pattern.permute.xlu0 0
        %627 = vperm.xlu0 %626, %v624
        %v628 = vpop.permute.xlu0 %627
        %v631 = vsel %vm478, %v623, 0
        %633 = vmatpush.msra.mxu0 0.0
        %634 = vmatpush.msra.mxu0 0.0
        %635 = vmatpush.msra.mxu0 0.0
        %636 = vmatpush.msra.mxu0 0.0
        %637 = vmatpush.msra.mxu0 0.0
        %638 = vmatpush.msra.mxu0 0.0
        %639 = vmatpush.msra.mxu0 0.0
        %640 = vmatpush.msra.mxu0 0.0
        %641 = vmatpush.msra.mxu0 0.0
        %642 = vmatpush.msra.mxu0 0.0
        %643 = vmatpush.msra.mxu0 0.0
        %644 = vmatpush.msra.mxu0 0.0
        %645 = vmatpush.msra.mxu0 %v619
        %646 = vmatpush.msra.mxu0 %v615
        %647 = vmatpush.msra.mxu0 %v611
        %648 = vmatpush.msra.mxu0 %v607
        %649 = vmatmul.f32.gmra.mxu0 %v631
        %v650 = vpop.f32.mrf.mxu0
        %v651 = vadd.f32 %v628, %v650
        %652 = vdwg.mxu0
        %653 = vmatpush.msra.mxu0 0.0
        %654 = vmatpush.msra.mxu0 0.0
        %655 = vmatpush.msra.mxu0 0.0
        %656 = vmatpush.msra.mxu0 0.0
        %657 = vmatpush.msra.mxu0 0.0
        %658 = vmatpush.msra.mxu0 0.0
        %659 = vmatpush.msra.mxu0 0.0
        %660 = vmatpush.msra.mxu0 0.0
        %661 = vmatpush.msra.mxu0 0.0
        %662 = vmatpush.msra.mxu0 0.0
        %663 = vmatpush.msra.mxu0 0.0
        %664 = vmatpush.msra.mxu0 0.0
        %665 = vmatpush.msra.mxu0 %v620
        %666 = vmatpush.msra.mxu0 %v616
        %667 = vmatpush.msra.mxu0 %v612
        %668 = vmatpush.msra.mxu0 %v608
        %669 = vmatmul.f32.gmra.mxu0 %v631
        %v670 = vpop.f32.mrf.mxu0
        %v671 = vadd.f32 %v628, %v670
        %672 = vdwg.mxu0
        %673 = vmatpush.msra.mxu0 0.0
        %674 = vmatpush.msra.mxu0 0.0
        %675 = vmatpush.msra.mxu0 0.0
        %676 = vmatpush.msra.mxu0 0.0
        %677 = vmatpush.msra.mxu0 0.0
        %678 = vmatpush.msra.mxu0 0.0
        %679 = vmatpush.msra.mxu0 0.0
        %680 = vmatpush.msra.mxu0 0.0
        %681 = vmatpush.msra.mxu0 0.0
        %682 = vmatpush.msra.mxu0 0.0
        %683 = vmatpush.msra.mxu0 0.0
        %684 = vmatpush.msra.mxu0 0.0
        %685 = vmatpush.msra.mxu0 %v621
        %686 = vmatpush.msra.mxu0 %v617
        %687 = vmatpush.msra.mxu0 %v613
        %688 = vmatpush.msra.mxu0 %v609
        %689 = vmatmul.f32.gmra.mxu0 %v631
        %v690 = vpop.f32.mrf.mxu0
        %v691 = vadd.f32 %v628, %v690
        %692 = vdwg.mxu0
        %693 = vmatpush.msra.mxu0 0.0
        %694 = vmatpush.msra.mxu0 0.0
        %695 = vmatpush.msra.mxu0 0.0
        %696 = vmatpush.msra.mxu0 0.0
        %697 = vmatpush.msra.mxu0 0.0
        %698 = vmatpush.msra.mxu0 0.0
        %699 = vmatpush.msra.mxu0 0.0
        %700 = vmatpush.msra.mxu0 0.0
        %701 = vmatpush.msra.mxu0 0.0
        %702 = vmatpush.msra.mxu0 0.0
        %703 = vmatpush.msra.mxu0 0.0
        %704 = vmatpush.msra.mxu0 0.0
        %705 = vmatpush.msra.mxu0 %v622
        %706 = vmatpush.msra.mxu0 %v618
        %707 = vmatpush.msra.mxu0 %v614
        %708 = vmatpush.msra.mxu0 %v610
        %709 = vmatmul.f32.gmra.mxu0 %v631
        %v710 = vpop.f32.mrf.mxu0
        %v711 = vadd.f32 %v628, %v710
        %712 = vdwg.mxu0
        %713 = vst [vmem:[%s272] sm:$0xff] %v651
        %714 = vst [vmem:[%s272 + $0x8] sm:$0xff] %v671
        %715 = vst [vmem:[%s272 + $0x10] sm:$0xff] %v691
        %716 = vst [vmem:[%s272 + $0x18] sm:$0xff] %v711
        %s717 = sand.u32 %s181, 1
        %s718 = scalar_lea.sflag [#allocation3], %s717
        %s719 = sand.u32 %s181, 1
        %s720 = smul.addr %s719, 32
        %s721 = scalar_lea.vmem [#allocation2], %s720
        // Predicated region
        $region49: #{tpu_custom_call.1} parent=47 // pred_check
          %p722 = pneg %p191
        $region50: #{tpu_custom_call.1} parent=47 // pred_check_branch
          %724 = sbr.rel (%p722) target = $region52
        $region51: #{tpu_custom_call.1} parent=47 // pred_region
          %s725 = smul.u32 4, %s21
          %727 = vsyncadd %s718, 0
          %s728 = smul.addr %s725, 8
          %s729 = scalar_lea.hbm %s7, %s728
          %s731 = sshll.u32 %s721, 4
          %s732 = int_to_ptr.vmem [resolvable:$true] %s731
          %s733 = sshll.u32 %s729, 4
          %s734 = int_to_ptr.hbm [resolvable:$true] %s733
          %736 = dma.vmem_to_hbm [thread:$0]  %s732, 512, %s734, %s718
        $region52: #{tpu_custom_call.1} parent=47 // pred_fallthru
          _
      $region48: #{tpu_custom_call.1} parent=5 // pred_fallthru
        _
      %p737 = scmp.le.s32.totalorder 2, %s16
      // Predicated region
      $region53: #{tpu_custom_call.1} parent=5 // pred_check
        %p738 = pneg %p737
      $region54: #{tpu_custom_call.1} parent=5 // pred_check_branch
        %740 = sbr.rel (%p738) target = $region56
      $region55: #{tpu_custom_call.1} parent=5 // pred_region
        %s741 = ssub.s32 %s16, 2
        // Predicated region
        $region57: #{tpu_custom_call.1} parent=55 // pred_check
          %p742 = pneg %p197
        $region58: #{tpu_custom_call.1} parent=55 // pred_check_branch
          %744 = sbr.rel (%p742) target = $region60
        $region59: #{tpu_custom_call.1} parent=55 // pred_region
          %s745 = sand.u32 %s182, 1
          %s746 = scalar_lea.sflag [#allocation3], %s745
          %s747 = sand.u32 %s182, 1
          %s748 = smul.addr %s747, 32
          %s749 = scalar_lea.vmem [#allocation2], %s748
          %751 = dma.done %s746, 512
        $region60: #{tpu_custom_call.1} parent=55 // pred_fallthru
          _
      $region56: #{tpu_custom_call.1} parent=5 // pred_fallthru
        _
    $region6: #{tpu_custom_call.1} parent=1 // loop_footer
      %s20 = sadd.s32 1, %s16
    $region7: #{tpu_custom_call.1} parent=1 // loop_footer_branch
      %15 = sbr.rel target = $region3
    $region8: #{tpu_custom_call.1} parent=1 // loop_exit
      _
    %752 = vsyncpa [#allocation3], 1
    %s753 = scalar_lea.sflag [#allocation3], 1
    %754 = vsyncpa %s753, 1

</llo_original>
